<compile_context>
chip_gen: v6e
topology: v6e:2x2x1
jax: 0.10.0
libtpu: 0.0.40
codegen_flags: <defaults>
</compile_context>

<pallas_src>
import functools

import jax
import jax.numpy as jnp
from jax.experimental import pallas as pl
from jax.experimental.pallas import tpu as pltpu


def _cdiv(a, b):
    return (a + b - 1) // b


def _round_up(a, b):
    return _cdiv(a, b) * b


def _vmem_capacity_bytes():
    """Physical VMEM of the local TPU generation; conservative fallback."""
    try:
        info = pltpu.get_tpu_info()
        cap = getattr(info, "vmem_capacity_bytes", None)
        if cap:
            return int(cap)
    except Exception:
        pass
    return 64 * 1024 * 1024  # safe on every generation (v7x has 64 MiB)


def _choose_rows_tile(n_prows, lane_dim, itemsize, sublane, vmem_cap):
    row_bytes = lane_dim * itemsize
    # VMEM cost per block row: in + out blocks, double-buffered
    # (2 * 2 * itemsize bytes/elem) plus ~3 live f32 temporaries in the body.
    cost_per_row = lane_dim * (4 * itemsize + 12)
    budget = vmem_cap // 2                 # ~64 MiB on v5e/v6e, ~32 MiB on v7x
    block_cap = 16 * 1024 * 1024           # per-block byte cap
    block_floor = 1 * 1024 * 1024          # never shrink blocks below ~1 MiB

    t = budget // max(cost_per_row, 1)
    t = min(t, block_cap // max(row_bytes, 1))
    t = min(t, _round_up(n_prows, sublane))
    # Prefer >= 8 grid steps (both v7x TensorCores + pipeline overlap), unless
    # that would force blocks under the 1 MiB floor — tiny blocks cost more in
    # per-step overhead than the lost overlap is worth.
    steps_cap = _round_up(_cdiv(n_prows, 8), sublane)
    floor_rows = _round_up(max(block_floor // max(row_bytes, 1), sublane), sublane)
    t = min(t, max(steps_cap, floor_rows))
    t = max(sublane, (t // sublane) * sublane)   # sublane-packing aligned
    return int(t)


def _rmsnorm_kernel(x_ref, *rest, sqrt_dim, pack, has_weight):
    idx = 0
    seg_ref = None
    w_ref = None
    if pack > 1:
        seg_ref = rest[idx]
        idx += 1
    if has_weight:
        w_ref = rest[idx]
        idx += 1
    o_ref = rest[idx]

    xf = x_ref[...].astype(jnp.float32)            # (rows_tile, lane_dim)
    sq = xf * xf

    if pack > 1:
        # Segmented sum of squares, broadcast back across each sub-row's
        # lanes, as ONE logical matmul with the block-diagonal 0/1 matrix B:
        #   ss[:, l] = sum_{l' : l'//dim == l//dim} sq[:, l']
        # sq is split hi/lo into two bf16 single-pass MXU dots so the result
        # is accurate to ~2^-16 relative without Precision.HIGHEST's 6 passes.
        seg = seg_ref[...]                          # bf16, exactly 0/1
        sq_hi = sq.astype(jnp.bfloat16)
        sq_lo = (sq - sq_hi.astype(jnp.float32)).astype(jnp.bfloat16)
        ss = (jnp.dot(sq_hi, seg, preferred_element_type=jnp.float32)
              + jnp.dot(sq_lo, seg, preferred_element_type=jnp.float32))
    else:
        ss = jnp.sum(sq, axis=-1, keepdims=True)    # XLU lane reduction

    # torch: norm = ||x|| * dim**-0.5 ; y = x / norm.clamp(min=1e-8)
    #   =>   1/norm = rsqrt(ss) * sqrt(dim), clamped from above at 1e8.
    inv = jnp.minimum(jax.lax.rsqrt(ss) * sqrt_dim, 1e8)
    y = xf * inv

    if has_weight:
        y = y * w_ref[...]                          # weight kept in f32

    o_ref[...] = y.astype(o_ref.dtype)


def rmsnorm(x, weight=None, *, rows_tile=None, buffer_count=None):
    """RMSNorm over the last axis of x. weight: (dim,) or None."""
    dim = x.shape[-1]
    orig_shape = x.shape
    orig_dtype = x.dtype
    n_rows = int(x.size) // dim

    itemsize = jnp.dtype(x.dtype).itemsize
    sublane = {4: 8, 2: 16, 1: 32}.get(itemsize, 8)

    # Lane-dense packing of narrow rows: output width stays a full 128 lanes.
    if dim < 128 and 128 % dim == 0:
        pack = 128 // dim
    else:
        pack = 1
        # TODO(synk): masked pack (floor(128/dim) sub-rows + zeroed tail lanes)
        # for dim < 128 with 128 % dim != 0; those dims currently fall back to
        # a narrow output block (masked stores).
    lane_dim = dim * pack

    x_flat = x.reshape(n_rows, dim)
    pad_rows = (-n_rows) % pack
    if pad_rows:
        # <= pack-1 zero rows so the packed reshape is always valid.
        x_flat = jnp.concatenate(
            [x_flat, jnp.zeros((pad_rows, dim), x.dtype)], axis=0)
    n_prows = (n_rows + pad_rows) // pack
    x2 = x_flat.reshape(n_prows, lane_dim)          # row-major: free reshape

    vmem_cap = _vmem_capacity_bytes()
    if rows_tile is None:
        rows_tile = _choose_rows_tile(n_prows, lane_dim, itemsize, sublane,
                                      vmem_cap)
    else:
        rows_tile = max(sublane, _round_up(int(rows_tile), sublane))

    grid = (pl.cdiv(n_prows, rows_tile),)
    has_weight = weight is not None

    if buffer_count is None:
        x_spec = pl.BlockSpec((rows_tile, lane_dim), lambda i: (i, 0))
    else:
        # v7x sweep knob: deeper input pipeline if xprof shows DMA gaps.
        x_spec = pl.BlockSpec((rows_tile, lane_dim), lambda i: (i, 0),
                              pipeline_mode=pl.Buffered(buffer_count))
    in_specs = [x_spec]
    args = [x2]

    if pack > 1:
        # Block-diagonal 0/1 segment matrix, resident across all grid steps
        # (constant index_map -> no per-step rebuild or re-DMA).
        ids = jnp.arange(lane_dim, dtype=jnp.int32) // dim
        seg = (ids[:, None] == ids[None, :]).astype(jnp.bfloat16)
        in_specs.append(pl.BlockSpec((lane_dim, lane_dim), lambda i: (0, 0)))
        args.append(seg)

    if has_weight:
        # Keep the learned weight in f32 end-to-end (matches torch reference).
        w2 = jnp.tile(jnp.asarray(weight, dtype=jnp.float32).reshape(1, dim),
                      (1, pack))
        in_specs.append(pl.BlockSpec((1, lane_dim), lambda i: (0, 0)))
        args.append(w2)

    out = pl.pallas_call(
        functools.partial(_rmsnorm_kernel, sqrt_dim=float(dim) ** 0.5,
                          pack=pack, has_weight=has_weight),
        out_shape=jax.ShapeDtypeStruct((n_prows, lane_dim), orig_dtype),
        grid_spec=pltpu.PrefetchScalarGridSpec(
            num_scalar_prefetch=0,
            grid=grid,
            in_specs=in_specs,
            out_specs=pl.BlockSpec((rows_tile, lane_dim), lambda i: (i, 0)),
        ),
        compiler_params=pltpu.CompilerParams(
            dimension_semantics=("parallel",),
            vmem_limit_bytes=(3 * vmem_cap) // 4,
        ),
    )(*args)

    out = out.reshape(n_rows + pad_rows, dim)
    if pad_rows:
        out = out[:n_rows]
    return out.reshape(orig_shape)


def rmsnorm_reference(x, weight):
    dim = x.shape[-1]
    xf = x.astype(jnp.float32)
    norm = jnp.sqrt(jnp.sum(xf * xf, axis=-1, keepdims=True)) * (float(dim) ** -0.5)
    y = xf / jnp.maximum(norm, 1e-8)
    if weight is not None:
        y = y * weight.astype(jnp.float32)
    return y.astype(x.dtype)


if __name__ == "__main__":
    # Shapes implied by the module: (..., dim) with a learned (dim,) weight.
    batch, seq, dim = 2, 8, 32
    key = jax.random.PRNGKey(0)
    k1, k2, k3, k4 = jax.random.split(key, 4)

    # 1) Packed lane-dense path (dim < 128), with a non-trivial weight.
    x = jax.random.normal(k1, (batch, seq, dim), dtype=jnp.float32)
    weight = 1.0 + 0.05 * jax.random.normal(k2, (dim,), dtype=jnp.float32)
    out = jax.block_until_ready(rmsnorm(x, weight))
    ref = rmsnorm_reference(x, weight)
    assert out.shape == x.shape and out.dtype == x.dtype
    assert jnp.allclose(out, ref, atol=1e-3, rtol=1e-3), "mismatch (packed, weight)"

    # 2) Packed path with row padding (15 rows, pack=4), scale=False.
    xp = jax.random.normal(k3, (3, 5, dim), dtype=jnp.float32)
    outp = jax.block_until_ready(rmsnorm(xp, None))
    refp = rmsnorm_reference(xp, None)
    assert outp.shape == xp.shape
    assert jnp.allclose(outp, refp, atol=1e-3, rtol=1e-3), "mismatch (packed, padded)"

    # 3) Unpacked lane-dense path (dim >= 128), partial last row block.
    xu = jax.random.normal(k4, (3, 5, 256), dtype=jnp.float32)
    outu = jax.block_until_ready(rmsnorm(xu, None))
    refu = rmsnorm_reference(xu, None)
    assert outu.shape == xu.shape
    assert jnp.allclose(outu, refu, atol=1e-3, rtol=1e-3), "mismatch (unpacked)"

    print("KERNEL_OK")
</pallas_src>

<mosaic_0001>
module attributes {stable_mosaic.version = 11 : i64} {
  func.func @_rmsnorm_kernel(%arg0: i32, %arg1: memref<8x128xf32, #tpu.memory_space<vmem>>, %arg2: memref<128x128xbf16, #tpu.memory_space<vmem>>, %arg3: memref<1x128xf32, #tpu.memory_space<vmem>>, %arg4: memref<8x128xf32, #tpu.memory_space<vmem>>) attributes {dimension_semantics = [#tpu.dimension_semantics<parallel>], iteration_bounds = array<i64: 1>, scalar_prefetch = 0 : i64, scratch_operands = 0 : i64, tpu.core_type = #tpu.core_type<tc>, window_params = [{transform_indices = @transform_0, window_bounds = array<i64: 8, 128>}, {pipeline_mode = #tpu.pipeline_mode<synchronous>, transform_indices = @transform_1, window_bounds = array<i64: 128, 128>}, {pipeline_mode = #tpu.pipeline_mode<synchronous>, transform_indices = @transform_2, window_bounds = array<i64: 1, 128>}, {transform_indices = @transform_3, window_bounds = array<i64: 8, 128>}]} {
    %c0 = arith.constant 0 : index
    %c0_0 = arith.constant 0 : index
    %0 = vector.load %arg1[%c0, %c0_0] : memref<8x128xf32, #tpu.memory_space<vmem>>, vector<8x128xf32>
    %1 = arith.mulf %0, %0 : vector<8x128xf32>
    %c0_1 = arith.constant 0 : index
    %c0_2 = arith.constant 0 : index
    %2 = vector.load %arg2[%c0_1, %c0_2] : memref<128x128xbf16, #tpu.memory_space<vmem>>, vector<128x128xbf16>
    %3 = arith.truncf %1 : vector<8x128xf32> to vector<8x128xbf16>
    %4 = arith.extf %3 : vector<8x128xbf16> to vector<8x128xf32>
    %5 = arith.subf %1, %4 : vector<8x128xf32>
    %6 = arith.truncf %5 : vector<8x128xf32> to vector<8x128xbf16>
    %cst = arith.constant dense<0.000000e+00> : vector<8x128xf32>
    %7 = tpu.matmul %3, %2, %cst {dimension_numbers = #tpu.dot_dimension_numbers<[1], [0], [0], [1], [0, 0, 1, 1], [], []>} : vector<8x128xbf16>, vector<128x128xbf16>, vector<8x128xf32> -> vector<8x128xf32>
    %cst_3 = arith.constant dense<0.000000e+00> : vector<8x128xf32>
    %8 = tpu.matmul %6, %2, %cst_3 {dimension_numbers = #tpu.dot_dimension_numbers<[1], [0], [0], [1], [0, 0, 1, 1], [], []>} : vector<8x128xbf16>, vector<128x128xbf16>, vector<8x128xf32> -> vector<8x128xf32>
    %9 = arith.addf %7, %8 : vector<8x128xf32>
    %10 = math.rsqrt %9 : vector<8x128xf32>
    %cst_4 = arith.constant 5.65685415 : f32
    %11 = vector.broadcast %cst_4 : f32 to vector<8x128xf32>
    %12 = arith.mulf %10, %11 : vector<8x128xf32>
    %cst_5 = arith.constant 1.000000e+08 : f32
    %13 = vector.broadcast %cst_5 : f32 to vector<8x128xf32>
    %14 = arith.minimumf %12, %13 : vector<8x128xf32>
    %15 = arith.mulf %0, %14 : vector<8x128xf32>
    %c0_6 = arith.constant 0 : index
    %c0_7 = arith.constant 0 : index
    %16 = vector.load %arg3[%c0_6, %c0_7] : memref<1x128xf32, #tpu.memory_space<vmem>>, vector<1x128xf32>
    %17 = vector.broadcast %16 : vector<1x128xf32> to vector<8x128xf32>
    %18 = arith.mulf %15, %17 : vector<8x128xf32>
    %c0_8 = arith.constant 0 : index
    %c0_9 = arith.constant 0 : index
    %19 = vector.load %arg4[%c0_8, %c0_9] : memref<8x128xf32, #tpu.memory_space<vmem>>, vector<8x128xf32>
    tpu.vector_store %arg4[%c0_8, %c0_9], %18 {strides = array<i32>} : memref<8x128xf32, #tpu.memory_space<vmem>>, vector<8x128xf32>,
    return
  }
  func.func @transform_0(%arg0: i32) -> (i32, i32) {
    %c0_i32 = arith.constant 0 : i32
    %c0_i32_0 = arith.constant 0 : i32
    return %arg0, %c0_i32 : i32, i32
  }
  func.func @transform_1(%arg0: i32) -> (i32, i32) {
    %c0_i32 = arith.constant 0 : i32
    %c0_i32_0 = arith.constant 0 : i32
    %c0_i32_1 = arith.constant 0 : i32
    return %c0_i32, %c0_i32_0 : i32, i32
  }
  func.func @transform_2(%arg0: i32) -> (i32, i32) {
    %c0_i32 = arith.constant 0 : i32
    %c0_i32_0 = arith.constant 0 : i32
    %c0_i32_1 = arith.constant 0 : i32
    return %c0_i32, %c0_i32_0 : i32, i32
  }
  func.func @transform_3(%arg0: i32) -> (i32, i32) {
    %c0_i32 = arith.constant 0 : i32
    %c0_i32_0 = arith.constant 0 : i32
    return %arg0, %c0_i32 : i32, i32
  }
}

</mosaic_0001>

<llo_original>
// kernel: tpu_custom_call.1
$region0: #{tpu_custom_call.1}
  #allocation0 [shape = 'u32[]', space=smem, size = 0x4, offset = 0x4, fixed_abs, tag = 'smem constant byte address 0x4 - core index']
  #allocation1 [shape = 'u32[144,128]{1,0:T(1,128)}', space=vmem, size = 0x12000, scoped, tag = 'internal scratch']
  %s0 = inlined_call_operand.hbm [shape: f32[4,128], index: 0, kind: input, shape index: {}]
  %s1 = inlined_call_operand.hbm [shape: bf16[128,128], index: 1, kind: input, shape index: {}]
  %s2 = inlined_call_operand.vmem [shape: f32[1,128], index: 2, kind: input, shape index: {}]
  %s3 = inlined_call_operand.hbm [shape: f32[4,128], index: 3, kind: output, shape index: {}]
  %s4 = sld [smem:[#allocation0]]
  $region30: #{tpu_custom_call.1} parent=0
    _
  %s6 = ssub.s32 1, %s4
  %s7 = scalar_select 0, %s6, %s4
  $region1: #{tpu_custom_call.1} parent=0
    #allocation2 [shape = 'u8[4096]{0}', space=vmem, size = 0x1000, scoped, tag = 'input window, operand 0, single buffered']
    #allocation3 [shape = 's32[1]{0}', space=sflag, size = 0x4, scoped, tag = 'scoped memory for tpu_custom_call.1']
    #allocation4 [shape = 's32[1]{0}', space=sflag, size = 0x4, scoped, tag = 'scoped memory for tpu_custom_call.1']
    #allocation5 [shape = 'u8[32768]{0}', space=vmem, size = 0x8000, scoped, tag = 'input window, operand 1, single buffered']
    #allocation6 [shape = 's32[1]{0}', space=sflag, size = 0x4, scoped, tag = 'scoped memory for tpu_custom_call.1']
    #allocation7 [shape = 'u8[4096]{0}', space=vmem, size = 0x1000, scoped, tag = 'output window, operand 0, single buffered']
    %8 = vsyncpa [#allocation3], 0
    %9 = vsyncpa [#allocation6], 0
    %10 = vsyncpa [#allocation4], 0
    // Predicated region
    $region2: #{tpu_custom_call.1} parent=1 // pred_check
      _
    $region3: #{tpu_custom_call.1} parent=1 // pred_check_branch
      %12 = sbr.rel (0) target = $region5
    $region4: #{tpu_custom_call.1} parent=1 // pred_region
      %s14 = ssub.s32 128, 64
      %15 = vsyncadd [#allocation3], %s14
      %s16 = sshll.u32 [#allocation2], 4
      %s17 = int_to_ptr.vmem [resolvable:$true] %s16
      %22 = dma.hbm_to_vmem [thread:$0]  %s0, 64, %s17, [#allocation3], 64, 64, 4
    $region5: #{tpu_custom_call.1} parent=1 // pred_fallthru
      _
    // Predicated region
    $region6: #{tpu_custom_call.1} parent=1 // pred_check
      _
    $region7: #{tpu_custom_call.1} parent=1 // pred_check_branch
      %24 = sbr.rel (0) target = $region9
    $region8: #{tpu_custom_call.1} parent=1 // pred_region
      %s26 = ssub.s32 1024, 1024
      %27 = vsyncadd [#allocation6], %s26
      %s28 = sshll.u32 [#allocation5], 4
      %s29 = int_to_ptr.vmem [resolvable:$true] %s28
      %34 = dma.hbm_to_vmem [thread:$0]  %s1, 1024, %s29, [#allocation6], 64, 64, 4
    $region9: #{tpu_custom_call.1} parent=1 // pred_fallthru
      _
    // Predicated region
    $region10: #{tpu_custom_call.1} parent=1 // pred_check
      _
    $region11: #{tpu_custom_call.1} parent=1 // pred_check_branch
      %36 = sbr.rel (0) target = $region13
    $region12: #{tpu_custom_call.1} parent=1 // pred_region
      _
    $region13: #{tpu_custom_call.1} parent=1 // pred_fallthru
      _
    // Predicated region
    $region14: #{tpu_custom_call.1} parent=1 // pred_check
      _
    $region15: #{tpu_custom_call.1} parent=1 // pred_check_branch
      %38 = sbr.rel (0) target = $region17
    $region16: #{tpu_custom_call.1} parent=1 // pred_region
      %39 = dma.done [#allocation3], 128
    $region17: #{tpu_custom_call.1} parent=1 // pred_fallthru
      _
    // Predicated region
    $region18: #{tpu_custom_call.1} parent=1 // pred_check
      _
    $region19: #{tpu_custom_call.1} parent=1 // pred_check_branch
      %41 = sbr.rel (0) target = $region21
    $region20: #{tpu_custom_call.1} parent=1 // pred_region
      %42 = dma.done [#allocation6], 1024
    $region21: #{tpu_custom_call.1} parent=1 // pred_fallthru
      _
    %v44 = vld [vmem:[#allocation2] sm:$0xff]
    %v45 = vmul.f32 %v44, %v44
    %v46 = vld [vmem:[#allocation5] sm:$0xf]
    %v47 = vld [vmem:[#allocation5 + $0x4] sm:$0xf]
    %v48 = vld [vmem:[#allocation5 + $0x8] sm:$0xf]
    %v49 = vld [vmem:[#allocation5 + $0xc] sm:$0xf]
    %v50 = vld [vmem:[#allocation5 + $0x10] sm:$0xf]
    %v51 = vld [vmem:[#allocation5 + $0x14] sm:$0xf]
    %v52 = vld [vmem:[#allocation5 + $0x18] sm:$0xf]
    %v53 = vld [vmem:[#allocation5 + $0x1c] sm:$0xf]
    %v54 = vld [vmem:[#allocation5 + $0x20] sm:$0xf]
    %v55 = vld [vmem:[#allocation5 + $0x24] sm:$0xf]
    %v56 = vld [vmem:[#allocation5 + $0x28] sm:$0xf]
    %v57 = vld [vmem:[#allocation5 + $0x2c] sm:$0xf]
    %v58 = vld [vmem:[#allocation5 + $0x30] sm:$0xf]
    %v59 = vld [vmem:[#allocation5 + $0x34] sm:$0xf]
    %v60 = vld [vmem:[#allocation5 + $0x38] sm:$0xf]
    %v61 = vld [vmem:[#allocation5 + $0x3c] sm:$0xf]
    %v62 = vpack.c.bf16 %v45, %v45
    %v63 = vunpack.c.l.bf16 %v62
    %v64 = vsub.f32 %v45, %v63
    %v65 = vpack.c.bf16 %v64, %v64
    %v82 = vunpack.c.l.b16 %v46
    %v83 = vunpack.c.l.b16 %v47
    %v84 = vunpack.c.l.b16 %v48
    %v85 = vunpack.c.l.b16 %v49
    %v86 = vunpack.c.l.b16 %v50
    %v87 = vunpack.c.l.b16 %v51
    %v88 = vunpack.c.l.b16 %v52
    %v89 = vunpack.c.l.b16 %v53
    %v90 = vunpack.c.l.b16 %v54
    %v91 = vunpack.c.l.b16 %v55
    %v92 = vunpack.c.l.b16 %v56
    %v93 = vunpack.c.l.b16 %v57
    %v94 = vunpack.c.l.b16 %v58
    %v95 = vunpack.c.l.b16 %v59
    %v96 = vunpack.c.l.b16 %v60
    %v97 = vunpack.c.l.b16 %v61
    %v98 = vpack.c.b16 %v83, %v82
    %v99 = vpack.c.b16 %v85, %v84
    %v100 = vpack.c.b16 %v87, %v86
    %v101 = vpack.c.b16 %v89, %v88
    %v102 = vpack.c.b16 %v91, %v90
    %v103 = vpack.c.b16 %v93, %v92
    %v104 = vpack.c.b16 %v95, %v94
    %v105 = vpack.c.b16 %v97, %v96
    %114 = vmatprep.subr.bf16.mxu0 0
    %115 = vmatpush1.bf16.msra.mxu0 %v105
    %116 = vmatprep.subr.bf16.mxu0 0
    %117 = vmatpush1.bf16.msra.mxu0 %v104
    %118 = vmatprep.subr.bf16.mxu0 0
    %119 = vmatpush1.bf16.msra.mxu0 %v103
    %120 = vmatprep.subr.bf16.mxu0 0
    %121 = vmatpush1.bf16.msra.mxu0 %v102
    %122 = vmatprep.subr.bf16.mxu0 0
    %123 = vmatpush1.bf16.msra.mxu0 %v101
    %124 = vmatprep.subr.bf16.mxu0 0
    %125 = vmatpush1.bf16.msra.mxu0 %v100
    %126 = vmatprep.subr.bf16.mxu0 0
    %127 = vmatpush1.bf16.msra.mxu0 %v99
    %128 = vmatprep.subr.bf16.mxu0 0
    %129 = vmatpush1.bf16.msra.mxu0 %v98
    %130 = vmatprep.subr.bf16.mxu0 0
    %131 = vmatpush2.bf16.msra.mxu0 0
    %132 = vmatprep.subr.bf16.mxu0 0
    %133 = vmatpush2.bf16.msra.mxu0 0
    %134 = vmatprep.subr.bf16.mxu0 0
    %135 = vmatpush2.bf16.msra.mxu0 0
    %136 = vmatprep.subr.bf16.mxu0 0
    %137 = vmatpush2.bf16.msra.mxu0 0
    %138 = vmatprep.subr.bf16.mxu0 0
    %139 = vmatpush2.bf16.msra.mxu0 0
    %140 = vmatprep.subr.bf16.mxu0 0
    %141 = vmatpush2.bf16.msra.mxu0 0
    %142 = vmatprep.subr.bf16.mxu0 0
    %143 = vmatpush2.bf16.msra.mxu0 0
    %144 = vmatprep.subr.bf16.mxu0 0
    %145 = vmatpush2.bf16.msra.mxu0 0
    %146 = vmatprep.mubr.bf16.mxu0 0
    %147 = vmatmul.mubr.bf16.gmra.mxu0 %v65
    %v148 = vpop.f32.mrf.mxu0
    %v149 = vadd.f32 0.0, %v148
    %v150 = vpop.f32.mrf.mxu0
    %v151 = vpop.f32.mrf.mxu0
    %v152 = vpop.f32.mrf.mxu0
    %153 = vdwg.mxu0
    %154 = vmatprep.subr.bf16.mxu0 0
    %155 = vmatpush1.bf16.msra.mxu0 %v105
    %156 = vmatprep.subr.bf16.mxu0 0
    %157 = vmatpush1.bf16.msra.mxu0 %v104
    %158 = vmatprep.subr.bf16.mxu0 0
    %159 = vmatpush1.bf16.msra.mxu0 %v103
    %160 = vmatprep.subr.bf16.mxu0 0
    %161 = vmatpush1.bf16.msra.mxu0 %v102
    %162 = vmatprep.subr.bf16.mxu0 0
    %163 = vmatpush1.bf16.msra.mxu0 %v101
    %164 = vmatprep.subr.bf16.mxu0 0
    %165 = vmatpush1.bf16.msra.mxu0 %v100
    %166 = vmatprep.subr.bf16.mxu0 0
    %167 = vmatpush1.bf16.msra.mxu0 %v99
    %168 = vmatprep.subr.bf16.mxu0 0
    %169 = vmatpush1.bf16.msra.mxu0 %v98
    %170 = vmatprep.subr.bf16.mxu0 0
    %171 = vmatpush2.bf16.msra.mxu0 0
    %172 = vmatprep.subr.bf16.mxu0 0
    %173 = vmatpush2.bf16.msra.mxu0 0
    %174 = vmatprep.subr.bf16.mxu0 0
    %175 = vmatpush2.bf16.msra.mxu0 0
    %176 = vmatprep.subr.bf16.mxu0 0
    %177 = vmatpush2.bf16.msra.mxu0 0
    %178 = vmatprep.subr.bf16.mxu0 0
    %179 = vmatpush2.bf16.msra.mxu0 0
    %180 = vmatprep.subr.bf16.mxu0 0
    %181 = vmatpush2.bf16.msra.mxu0 0
    %182 = vmatprep.subr.bf16.mxu0 0
    %183 = vmatpush2.bf16.msra.mxu0 0
    %184 = vmatprep.subr.bf16.mxu0 0
    %185 = vmatpush2.bf16.msra.mxu0 0
    %186 = vmatprep.mubr.bf16.mxu0 0
    %187 = vmatmul.mubr.bf16.gmra.mxu0 %v62
    %v188 = vpop.f32.mrf.mxu0
    %v189 = vadd.f32 %v149, %v188
    %v190 = vpop.f32.mrf.mxu0
    %v191 = vpop.f32.mrf.mxu0
    %v192 = vpop.f32.mrf.mxu0
    %193 = vdwg.mxu0
    %v194 = vrsqrt.pop %v189
    %v195 = vmul.f32 %v194, 5.656854
    %v196 = vmin.f32 %v195, 1e+08
    %v197 = vmul.f32 %v44, %v196
    %v198 = vld [vmem:[%s2] sm:$0x1]
    %v200 = vlaneseq
    %v201 = vshrl.u32 %v200, 7
    %v202 = vsub.s32 0, %v201
    %v203 = vrot.slane %v198, %v202
    %v205 = vmul.f32 %v197, %v203
    %206 = vst [vmem:[#allocation7] sm:$0xff] %v205
    // Predicated region
    $region22: #{tpu_custom_call.1} parent=1 // pred_check
      _
    $region23: #{tpu_custom_call.1} parent=1 // pred_check_branch
      %208 = sbr.rel (0) target = $region25
    $region24: #{tpu_custom_call.1} parent=1 // pred_region
      %s210 = ssub.s32 128, 64
      %211 = vsyncadd [#allocation4], %s210
      %s212 = sshll.u32 [#allocation7], 4
      %s213 = int_to_ptr.vmem [resolvable:$true] %s212
      %218 = dma.vmem_to_hbm [thread:$0]  %s213, 64, %s3, [#allocation4], 64, 64, 4
    $region25: #{tpu_custom_call.1} parent=1 // pred_fallthru
      _
    // Predicated region
    $region26: #{tpu_custom_call.1} parent=1 // pred_check
      _
    $region27: #{tpu_custom_call.1} parent=1 // pred_check_branch
      %220 = sbr.rel (0) target = $region29
    $region28: #{tpu_custom_call.1} parent=1 // pred_region
      %221 = dma.done [#allocation4], 128
    $region29: #{tpu_custom_call.1} parent=1 // pred_fallthru
      _
    %222 = vsyncpa [#allocation3], 1
    %223 = vsyncpa [#allocation6], 1
    %224 = vsyncpa [#allocation4], 1

</llo_original>
